<compile_context>
chip_gen: v6e
topology: v6e:2x2x1
jax: 0.10.0
libtpu: 0.0.40
codegen_flags: <defaults>
</compile_context>

<pallas_src>
import jax
import jax.numpy as jnp
from jax.experimental import pallas as pl
from jax.experimental.pallas import tpu as pltpu


def _round_up(v, m):
    return (v + m - 1) // m * m


def _model_kernel(x_ref, w1_ref, b1_ref, w2_ref, b2_ref, out_ref, acc_ref):
    """One (tm, tk) step of the fused backbone-stand-in + fc head.

    x_ref  : (tm, tk)       bf16   flattened-image tile
    w1_ref : (tk, E_pad)    bf16   backbone projection weight tile
    b1_ref : (1, E_pad)     f32    backbone projection bias
    w2_ref : (E_pad, C_pad) bf16   fc weight (embed_dim -> num_class), padded
    b2_ref : (1, C_pad)     f32    fc bias, padded
    out_ref: (tm, C_pad)    f32    logits tile (written on last K step only)
    acc_ref: (tm, E_pad)    f32    VMEM accumulator across the K grid axis
    """
    k = pl.program_id(1)

    @pl.when(k == 0)
    def _init():
        acc_ref[...] = jnp.zeros_like(acc_ref)

    # Backbone stand-in projection: bf16 MXU matmul, f32 accumulation.
    acc_ref[...] += jnp.dot(
        x_ref[...], w1_ref[...], preferred_element_type=jnp.float32
    )

    @pl.when(k == pl.num_programs(1) - 1)
    def _epilogue():
        h = acc_ref[...] + b1_ref[...]                       # f32
        feats = jax.nn.gelu(h, approximate=True)             # f32 (tanh/EUP path)
        logits = jnp.dot(
            feats.astype(w2_ref.dtype), w2_ref[...],
            preferred_element_type=jnp.float32,
        ) + b2_ref[...]
        out_ref[...] = logits.astype(out_ref.dtype)


def moding_dif_models_forward(x_nchw, w1, b1, w2, b2):
    """x_nchw: (B, C, H, W) float32. Returns logits (B, num_class) float32."""
    B = x_nchw.shape[0]
    d_in = x_nchw.shape[1] * x_nchw.shape[2] * x_nchw.shape[3]
    embed_dim = w1.shape[1]
    num_class = w2.shape[1]

    # --- per-generation sizing -------------------------------------------
    try:
        vmem_cap = int(pltpu.get_tpu_info().vmem_capacity_bytes)
    except Exception:  # pragma: no cover - conservative fallback
        vmem_cap = 64 << 20
    # Bigger K tiles on 128 MiB parts (v5e/v6e), smaller on v7x (64 MiB).
    tk_target = 512 if vmem_cap >= (96 << 20) else 256

    # --- tile sizes & padded (lane/sublane-aligned) shapes ----------------
    tm = min(256, _round_up(max(B, 1), 16))          # bf16 sublane tile = 16 rows
    m_pad = _round_up(B, tm)
    tk = tk_target if d_in >= tk_target else _round_up(d_in, 128)
    k_pad = _round_up(d_in, tk)
    e_pad = _round_up(embed_dim, 128)                # lane-dense embed dim
    c_pad = _round_up(num_class, 128)                # lane-dense output dim

    # --- pad + cast at the wrapper boundary (bf16 activations/weights) ----
    x_flat = x_nchw.reshape(B, d_in)                 # glue reshape in plain JAX
    x_p = jnp.pad(x_flat, ((0, m_pad - B), (0, k_pad - d_in))).astype(jnp.bfloat16)
    w1_p = jnp.pad(w1, ((0, k_pad - d_in), (0, e_pad - embed_dim))).astype(jnp.bfloat16)
    w2_p = jnp.pad(w2, ((0, e_pad - embed_dim), (0, c_pad - num_class))).astype(jnp.bfloat16)
    b1_p = jnp.pad(b1.reshape(1, embed_dim),
                   ((0, 0), (0, e_pad - embed_dim))).astype(jnp.float32)
    b2_p = jnp.pad(b2.reshape(1, num_class),
                   ((0, 0), (0, c_pad - num_class))).astype(jnp.float32)

    grid = (m_pad // tm, k_pad // tk)

    # --- VMEM budget: double-buffered tiles + accumulator, 75% phys cap ---
    est = 2 * (tm * tk * 2            # x tile (bf16)
               + tk * e_pad * 2       # w1 tile (bf16)
               + e_pad * 4            # b1
               + e_pad * c_pad * 2    # w2 (bf16, resident)
               + c_pad * 4            # b2
               + tm * c_pad * 4)      # out tile (f32)
    est += tm * e_pad * 4             # accumulator scratch
    vmem_limit = int(min(max(2 * est, 32 << 20), int(0.75 * vmem_cap)))

    # TODO(synk): if this forward is called repeatedly with fixed weights,
    #             keep w1/w2 resident across calls (pl.ANY + one-time DMA /
    #             cross-call prefetch) instead of re-streaming them per call.
    out_p = pl.pallas_call(
        _model_kernel,
        out_shape=jax.ShapeDtypeStruct((m_pad, c_pad), jnp.float32),
        grid_spec=pltpu.PrefetchScalarGridSpec(
            num_scalar_prefetch=0,
            grid=grid,
            in_specs=[
                pl.BlockSpec((tm, tk), lambda i, k: (i, k)),      # x
                pl.BlockSpec((tk, e_pad), lambda i, k: (k, 0)),   # w1
                pl.BlockSpec((1, e_pad), lambda i, k: (0, 0)),    # b1 (resident)
                pl.BlockSpec((e_pad, c_pad), lambda i, k: (0, 0)),  # w2 (resident)
                pl.BlockSpec((1, c_pad), lambda i, k: (0, 0)),    # b2 (resident)
            ],
            out_specs=pl.BlockSpec((tm, c_pad), lambda i, k: (i, 0)),
            scratch_shapes=[pltpu.VMEM((tm, e_pad), jnp.float32)],
        ),
        compiler_params=pltpu.CompilerParams(
            dimension_semantics=("parallel", "arbitrary"),
            vmem_limit_bytes=vmem_limit,
        ),
    )(x_p, w1_p, b1_p, w2_p, b2_p)

    return out_p[:B, :num_class]


if __name__ == "__main__":
    # Small shapes consistent with the module's forward:
    #   x: (B, C, H, W), embed_dim=32, num_class=8
    B, C, H, W = 2, 4, 16, 16
    embed_dim, num_class = 32, 8
    d_in = C * H * W

    key = jax.random.PRNGKey(0)
    kx, k1, k2, k3, k4 = jax.random.split(key, 5)

    x = jax.random.normal(kx, (B, C, H, W), dtype=jnp.float32)
    # Deterministic parameter init (synthetic weights, no checkpoint load).
    w1 = jax.random.normal(k1, (d_in, embed_dim), dtype=jnp.float32) * (1.0 / jnp.sqrt(d_in))
    b1 = jax.random.normal(k2, (embed_dim,), dtype=jnp.float32) * 0.01
    w2 = jax.random.normal(k3, (embed_dim, num_class), dtype=jnp.float32) * (1.0 / jnp.sqrt(embed_dim))
    b2 = jax.random.normal(k4, (num_class,), dtype=jnp.float32) * 0.01

    logits = moding_dif_models_forward(x, w1, b1, w2, b2)
    logits = jax.block_until_ready(logits)

    # Pure-JAX reference mirroring the kernel's bf16 input rounding.
    xb = x.reshape(B, d_in).astype(jnp.bfloat16).astype(jnp.float32)
    w1b = w1.astype(jnp.bfloat16).astype(jnp.float32)
    w2b = w2.astype(jnp.bfloat16).astype(jnp.float32)
    feats_ref = jax.nn.gelu(xb @ w1b + b1, approximate=True)
    logits_ref = feats_ref.astype(jnp.bfloat16).astype(jnp.float32) @ w2b + b2

    assert logits.shape == (B, num_class)
    max_err = float(jnp.max(jnp.abs(logits - logits_ref)))
    assert jnp.allclose(logits, logits_ref, atol=2e-3, rtol=2e-3), max_err

    print("KERNEL_OK")
</pallas_src>

<mosaic_0001>
module attributes {stable_mosaic.version = 11 : i64} {
  func.func @_model_kernel(%arg0: i32, %arg1: i32, %arg2: memref<16x256xbf16, #tpu.memory_space<vmem>>, %arg3: memref<256x128xbf16, #tpu.memory_space<vmem>>, %arg4: memref<1x128xf32, #tpu.memory_space<vmem>>, %arg5: memref<128x128xbf16, #tpu.memory_space<vmem>>, %arg6: memref<1x128xf32, #tpu.memory_space<vmem>>, %arg7: memref<16x128xf32, #tpu.memory_space<vmem>>, %arg8: memref<16x128xf32, #tpu.memory_space<vmem>>) attributes {dimension_semantics = [#tpu.dimension_semantics<parallel>, #tpu.dimension_semantics<arbitrary>], iteration_bounds = array<i64: 1, 4>, scalar_prefetch = 0 : i64, scratch_operands = 1 : i64, tpu.core_type = #tpu.core_type<tc>, window_params = [{transform_indices = @transform_0, window_bounds = array<i64: 16, 256>}, {transform_indices = @transform_1, window_bounds = array<i64: 256, 128>}, {pipeline_mode = #tpu.pipeline_mode<synchronous>, transform_indices = @transform_2, window_bounds = array<i64: 1, 128>}, {pipeline_mode = #tpu.pipeline_mode<synchronous>, transform_indices = @transform_3, window_bounds = array<i64: 128, 128>}, {pipeline_mode = #tpu.pipeline_mode<synchronous>, transform_indices = @transform_4, window_bounds = array<i64: 1, 128>}, {transform_indices = @transform_5, window_bounds = array<i64: 16, 128>}]} {
    %c0_i32 = arith.constant 0 : i32
    %0 = arith.cmpi eq, %arg1, %c0_i32 : i32
    %1 = arith.extui %0 : i1 to i32
    %c0_i32_0 = arith.constant 0 : i32
    %2 = arith.cmpi ne, %1, %c0_i32_0 : i32
    scf.if %2 {
      %cst_9 = arith.constant 0.000000e+00 : f32
      %12 = vector.broadcast %cst_9 : f32 to vector<16x128xf32>
      %c0_10 = arith.constant 0 : index
      %c0_11 = arith.constant 0 : index
      %13 = vector.load %arg8[%c0_10, %c0_11] : memref<16x128xf32, #tpu.memory_space<vmem>>, vector<16x128xf32>
      tpu.vector_store %arg8[%c0_10, %c0_11], %12 {strides = array<i32>} : memref<16x128xf32, #tpu.memory_space<vmem>>, vector<16x128xf32>,
    } else {
    }
    %c0 = arith.constant 0 : index
    %c0_1 = arith.constant 0 : index
    %3 = vector.load %arg8[%c0, %c0_1] : memref<16x128xf32, #tpu.memory_space<vmem>>, vector<16x128xf32>
    %c0_2 = arith.constant 0 : index
    %c0_3 = arith.constant 0 : index
    %4 = vector.load %arg2[%c0_2, %c0_3] : memref<16x256xbf16, #tpu.memory_space<vmem>>, vector<16x256xbf16>
    %c0_4 = arith.constant 0 : index
    %c0_5 = arith.constant 0 : index
    %5 = vector.load %arg3[%c0_4, %c0_5] : memref<256x128xbf16, #tpu.memory_space<vmem>>, vector<256x128xbf16>
    %cst = arith.constant dense<0.000000e+00> : vector<16x128xf32>
    %6 = tpu.matmul %4, %5, %cst {dimension_numbers = #tpu.dot_dimension_numbers<[1], [0], [0], [1], [0, 0, 1, 1], [], []>} : vector<16x256xbf16>, vector<256x128xbf16>, vector<16x128xf32> -> vector<16x128xf32>
    %7 = arith.addf %3, %6 : vector<16x128xf32>
    %c0_6 = arith.constant 0 : index
    %c0_7 = arith.constant 0 : index
    %8 = vector.load %arg8[%c0_6, %c0_7] : memref<16x128xf32, #tpu.memory_space<vmem>>, vector<16x128xf32>
    tpu.vector_store %arg8[%c0_6, %c0_7], %7 {strides = array<i32>} : memref<16x128xf32, #tpu.memory_space<vmem>>, vector<16x128xf32>,
    %c3_i32 = arith.constant 3 : i32
    %9 = arith.cmpi eq, %arg1, %c3_i32 : i32
    %10 = arith.extui %9 : i1 to i32
    %c0_i32_8 = arith.constant 0 : i32
    %11 = arith.cmpi ne, %10, %c0_i32_8 : i32
    scf.if %11 {
      %c0_9 = arith.constant 0 : index
      %c0_10 = arith.constant 0 : index
      %12 = vector.load %arg8[%c0_9, %c0_10] : memref<16x128xf32, #tpu.memory_space<vmem>>, vector<16x128xf32>
      %c0_11 = arith.constant 0 : index
      %c0_12 = arith.constant 0 : index
      %13 = vector.load %arg4[%c0_11, %c0_12] : memref<1x128xf32, #tpu.memory_space<vmem>>, vector<1x128xf32>
      %14 = vector.broadcast %13 : vector<1x128xf32> to vector<16x128xf32>
      %15 = arith.addf %12, %14 : vector<16x128xf32>
      %16 = arith.mulf %15, %15 : vector<16x128xf32>
      %17 = arith.mulf %15, %16 : vector<16x128xf32>
      %cst_13 = arith.constant 4.471500e-02 : f32
      %18 = vector.broadcast %cst_13 : f32 to vector<16x128xf32>
      %19 = arith.mulf %18, %17 : vector<16x128xf32>
      %20 = arith.addf %15, %19 : vector<16x128xf32>
      %cst_14 = arith.constant 0.797884583 : f32
      %21 = vector.broadcast %cst_14 : f32 to vector<16x128xf32>
      %22 = arith.mulf %21, %20 : vector<16x128xf32>
      %23 = math.tanh %22 : vector<16x128xf32>
      %cst_15 = arith.constant 1.000000e+00 : f32
      %24 = vector.broadcast %cst_15 : f32 to vector<16x128xf32>
      %25 = arith.addf %24, %23 : vector<16x128xf32>
      %cst_16 = arith.constant 5.000000e-01 : f32
      %26 = vector.broadcast %cst_16 : f32 to vector<16x128xf32>
      %27 = arith.mulf %26, %25 : vector<16x128xf32>
      %28 = arith.mulf %15, %27 : vector<16x128xf32>
      %29 = arith.truncf %28 : vector<16x128xf32> to vector<16x128xbf16>
      %c0_17 = arith.constant 0 : index
      %c0_18 = arith.constant 0 : index
      %30 = vector.load %arg5[%c0_17, %c0_18] : memref<128x128xbf16, #tpu.memory_space<vmem>>, vector<128x128xbf16>
      %cst_19 = arith.constant dense<0.000000e+00> : vector<16x128xf32>
      %31 = tpu.matmul %29, %30, %cst_19 {dimension_numbers = #tpu.dot_dimension_numbers<[1], [0], [0], [1], [0, 0, 1, 1], [], []>} : vector<16x128xbf16>, vector<128x128xbf16>, vector<16x128xf32> -> vector<16x128xf32>
      %c0_20 = arith.constant 0 : index
      %c0_21 = arith.constant 0 : index
      %32 = vector.load %arg6[%c0_20, %c0_21] : memref<1x128xf32, #tpu.memory_space<vmem>>, vector<1x128xf32>
      %33 = vector.broadcast %32 : vector<1x128xf32> to vector<16x128xf32>
      %34 = arith.addf %31, %33 : vector<16x128xf32>
      %c0_22 = arith.constant 0 : index
      %c0_23 = arith.constant 0 : index
      %35 = vector.load %arg7[%c0_22, %c0_23] : memref<16x128xf32, #tpu.memory_space<vmem>>, vector<16x128xf32>
      tpu.vector_store %arg7[%c0_22, %c0_23], %34 {strides = array<i32>} : memref<16x128xf32, #tpu.memory_space<vmem>>, vector<16x128xf32>,
    } else {
    }
    return
  }
  func.func @transform_0(%arg0: i32, %arg1: i32) -> (i32, i32) {
    %c0_i32 = arith.constant 0 : i32
    return %arg0, %arg1 : i32, i32
  }
  func.func @transform_1(%arg0: i32, %arg1: i32) -> (i32, i32) {
    %c0_i32 = arith.constant 0 : i32
    %c0_i32_0 = arith.constant 0 : i32
    return %arg1, %c0_i32 : i32, i32
  }
  func.func @transform_2(%arg0: i32, %arg1: i32) -> (i32, i32) {
    %c0_i32 = arith.constant 0 : i32
    %c0_i32_0 = arith.constant 0 : i32
    %c0_i32_1 = arith.constant 0 : i32
    return %c0_i32, %c0_i32_0 : i32, i32
  }
  func.func @transform_3(%arg0: i32, %arg1: i32) -> (i32, i32) {
    %c0_i32 = arith.constant 0 : i32
    %c0_i32_0 = arith.constant 0 : i32
    %c0_i32_1 = arith.constant 0 : i32
    return %c0_i32, %c0_i32_0 : i32, i32
  }
  func.func @transform_4(%arg0: i32, %arg1: i32) -> (i32, i32) {
    %c0_i32 = arith.constant 0 : i32
    %c0_i32_0 = arith.constant 0 : i32
    %c0_i32_1 = arith.constant 0 : i32
    return %c0_i32, %c0_i32_0 : i32, i32
  }
  func.func @transform_5(%arg0: i32, %arg1: i32) -> (i32, i32) {
    %c0_i32 = arith.constant 0 : i32
    %c0_i32_0 = arith.constant 0 : i32
    return %arg0, %c0_i32 : i32, i32
  }
}

</mosaic_0001>

<llo_original>
// kernel: tpu_custom_call.1
$region0: #{tpu_custom_call.1}
  #allocation0 [shape = 'u32[]', space=smem, size = 0x4, offset = 0x4, fixed_abs, tag = 'smem constant byte address 0x4 - core index']
  #allocation1 [shape = 'u32[144,128]{1,0:T(1,128)}', space=vmem, size = 0x12000, scoped, tag = 'internal scratch']
  #allocation2 [shape = 'f32[16,128]{1,0:T(8,128)}', space=vmem, size = 0x2000, scoped, tag = 'scratch operand']
  %s0 = inlined_call_operand.hbm [shape: bf16[16,1024], index: 0, kind: input, shape index: {}]
  %s1 = inlined_call_operand.hbm [shape: bf16[1024,128], index: 1, kind: input, shape index: {}]
  %s2 = inlined_call_operand.vmem [shape: f32[1,128], index: 2, kind: input, shape index: {}]
  %s3 = inlined_call_operand.hbm [shape: bf16[128,128], index: 3, kind: input, shape index: {}]
  %s4 = inlined_call_operand.vmem [shape: f32[1,128], index: 4, kind: input, shape index: {}]
  %s5 = inlined_call_operand.hbm [shape: f32[16,128], index: 5, kind: output, shape index: {}]
  %s6 = sld [smem:[#allocation0]]
  $region73: #{tpu_custom_call.1} parent=0
    _
  %s8 = ssub.s32 1, %s6
  %s9 = scalar_select 0, %s8, %s6
  $region1: #{tpu_custom_call.1} parent=0
    #allocation3 [shape = 'u8[16384]{0}', space=vmem, size = 0x4000, scoped, tag = 'input window, operand 0']
    #allocation4 [shape = 's32[2]{0}', space=sflag, size = 0x8, scoped, tag = 'scoped memory for tpu_custom_call.1']
    #allocation5 [shape = 's32[2]{0}', space=sflag, size = 0x8, scoped, tag = 'scoped memory for tpu_custom_call.1']
    #allocation6 [shape = 'u8[131072]{0}', space=vmem, size = 0x20000, scoped, tag = 'input window, operand 1']
    #allocation7 [shape = 's32[2]{0}', space=sflag, size = 0x8, scoped, tag = 'scoped memory for tpu_custom_call.1']
    #allocation8 [shape = 'u8[32768]{0}', space=vmem, size = 0x8000, scoped, tag = 'input window, operand 3, single buffered']
    #allocation9 [shape = 'u8[8192]{0}', space=vmem, size = 0x2000, scoped, tag = 'output window, operand 0, single buffered']
    %10 = vsyncpa [#allocation4], 0
    %s11 = scalar_lea.sflag [#allocation4], 1
    %12 = vsyncpa %s11, 0
    %13 = vsyncpa [#allocation7], 0
    %s14 = scalar_lea.sflag [#allocation7], 1
    %15 = vsyncpa %s14, 0
    %16 = vsyncpa [#allocation5], 0
    loop: start=0, step=1, limit=6
    $region2: #{tpu_custom_call.1} parent=1 // loop_pre_header
      _
    $region3: #{tpu_custom_call.1} parent=1 // loop_header
      %s18 = sphi 0, %s22
      %p19 = scmp.ge.s32.totalorder %s18, 6
      %s25 = sphi 0, %s37
      %s26 = sphi 0, %s33
      %s27 = sphi 0, %s25
      %s28 = sphi 0, %s26
      %s29 = sphi 0, %s27
      %s30 = sphi 0, %s28
      %s42 = sphi 0, %s44
      %s45 = sphi 0, %s42
      %s46 = sphi 0, %s45
      %s62 = sphi 0, %s46
      %s68 = sphi 0, %s70
      %s71 = sphi 0, %s68
      %s72 = sphi 0, %s71
      %s88 = sphi 0, %s72
      %s92 = sphi 0, %s92
      %s94 = sphi 0, %s92
      %s95 = sphi 0, %s94
      %s109 = sphi 0, %s95
      %s113 = sphi 0, %s113
      %s115 = sphi 0, %s113
      %s116 = sphi 0, %s115
      %s130 = sphi 0, %s116
      %s134 = sphi 0, %s134
      %s136 = sphi 0, %s134
      %s137 = sphi 0, %s136
      %s151 = sphi 0, %s137
      %s157 = sphi 0, %s159
      %s160 = sphi 0, %s157
      %s161 = sphi 0, %s160
      %s177 = sphi 0, %s161
    $region4: #{tpu_custom_call.1} parent=1 // loop_header_branch
      %21 = sbr.rel (%p19) target = $region8
    $region5: #{tpu_custom_call.1} parent=1 // loop_body
      %s23 = ssub.s32 %s18, 1
      %s24 = ssub.s32 %s18, 2
      %s31 = sadd.s32 1, %s26
      %p32 = scmp.ge.s32.totalorder %s31, 4
      %s33 = scalar_select %p32, 0, %s31
      %s34 = sadd.s32 1, %s25
      %s35 = scalar_select %p32, %s34, %s25
      %p36 = scmp.ge.s32.totalorder %s35, 1
      %s37 = scalar_select %p36, 0, %s35
      %s38 = ssub.s32 %s25, %s37
      %s39 = ssub.s32 %s26, %s33
      %s40 = sor.u32 %s38, %s39
      %p41 = scmp.eq.s32.totalorder %s40, 0
      %s43 = sadd.s32 %s42, 1
      %s44 = scalar_select %p41, %s42, %s43
      %p47 = pneg %p41
      %p48 = scmp.eq.s32.totalorder %s18, 3
      %p49 = por %p47, %p48
      %p50 = scmp.ne.s32.totalorder %s42, %s45
      %p51 = scmp.eq.s32.totalorder %s18, 0
      %p52 = por %p50, %p51
      %p53 = scmp.ne.s32.totalorder %s42, %s45
      %p54 = scmp.eq.s32.totalorder %s23, 3
      %p55 = por %p53, %p54
      %p56 = scmp.ne.s32.totalorder %s45, %s46
      %p57 = scmp.eq.s32.totalorder %s23, 0
      %p58 = por %p56, %p57
      %p59 = scmp.ne.s32.totalorder %s45, %s46
      %p60 = scmp.eq.s32.totalorder %s24, 3
      %p61 = por %p59, %p60
      %p63 = scmp.ne.s32.totalorder %s46, %s62
      %p64 = scmp.eq.s32.totalorder %s24, 0
      %p65 = por %p63, %p64
      %s66 = ssub.s32 %s26, %s33
      %p67 = scmp.eq.s32.totalorder %s66, 0
      %s69 = sadd.s32 %s68, 1
      %s70 = scalar_select %p67, %s68, %s69
      %p73 = pneg %p67
      %p74 = scmp.eq.s32.totalorder %s18, 3
      %p75 = por %p73, %p74
      %p76 = scmp.ne.s32.totalorder %s68, %s71
      %p77 = scmp.eq.s32.totalorder %s18, 0
      %p78 = por %p76, %p77
      %p79 = scmp.ne.s32.totalorder %s68, %s71
      %p80 = scmp.eq.s32.totalorder %s23, 3
      %p81 = por %p79, %p80
      %p82 = scmp.ne.s32.totalorder %s71, %s72
      %p83 = scmp.eq.s32.totalorder %s23, 0
      %p84 = por %p82, %p83
      %p85 = scmp.ne.s32.totalorder %s71, %s72
      %p86 = scmp.eq.s32.totalorder %s24, 3
      %p87 = por %p85, %p86
      %p89 = scmp.ne.s32.totalorder %s72, %s88
      %p90 = scmp.eq.s32.totalorder %s24, 0
      %p91 = por %p89, %p90
      %s93 = sadd.s32 %s92, 1
      %p96 = scmp.eq.s32.totalorder %s18, 3
      %p97 = scmp.ne.s32.totalorder %s92, %s94
      %p98 = scmp.eq.s32.totalorder %s18, 0
      %p99 = por %p97, %p98
      %p100 = scmp.ne.s32.totalorder %s92, %s94
      %p101 = scmp.eq.s32.totalorder %s23, 3
      %p102 = por %p100, %p101
      %p103 = scmp.ne.s32.totalorder %s94, %s95
      %p104 = scmp.eq.s32.totalorder %s23, 0
      %p105 = por %p103, %p104
      %p106 = scmp.ne.s32.totalorder %s94, %s95
      %p107 = scmp.eq.s32.totalorder %s24, 3
      %p108 = por %p106, %p107
      %p110 = scmp.ne.s32.totalorder %s95, %s109
      %p111 = scmp.eq.s32.totalorder %s24, 0
      %p112 = por %p110, %p111
      %s114 = sadd.s32 %s113, 1
      %p117 = scmp.eq.s32.totalorder %s18, 3
      %p118 = scmp.ne.s32.totalorder %s113, %s115
      %p119 = scmp.eq.s32.totalorder %s18, 0
      %p120 = por %p118, %p119
      %p121 = scmp.ne.s32.totalorder %s113, %s115
      %p122 = scmp.eq.s32.totalorder %s23, 3
      %p123 = por %p121, %p122
      %p124 = scmp.ne.s32.totalorder %s115, %s116
      %p125 = scmp.eq.s32.totalorder %s23, 0
      %p126 = por %p124, %p125
      %p127 = scmp.ne.s32.totalorder %s115, %s116
      %p128 = scmp.eq.s32.totalorder %s24, 3
      %p129 = por %p127, %p128
      %p131 = scmp.ne.s32.totalorder %s116, %s130
      %p132 = scmp.eq.s32.totalorder %s24, 0
      %p133 = por %p131, %p132
      %s135 = sadd.s32 %s134, 1
      %p138 = scmp.eq.s32.totalorder %s18, 3
      %p139 = scmp.ne.s32.totalorder %s134, %s136
      %p140 = scmp.eq.s32.totalorder %s18, 0
      %p141 = por %p139, %p140
      %p142 = scmp.ne.s32.totalorder %s134, %s136
      %p143 = scmp.eq.s32.totalorder %s23, 3
      %p144 = por %p142, %p143
      %p145 = scmp.ne.s32.totalorder %s136, %s137
      %p146 = scmp.eq.s32.totalorder %s23, 0
      %p147 = por %p145, %p146
      %p148 = scmp.ne.s32.totalorder %s136, %s137
      %p149 = scmp.eq.s32.totalorder %s24, 3
      %p150 = por %p148, %p149
      %p152 = scmp.ne.s32.totalorder %s137, %s151
      %p153 = scmp.eq.s32.totalorder %s24, 0
      %p154 = por %p152, %p153
      %s155 = ssub.s32 %s25, %s37
      %p156 = scmp.eq.s32.totalorder %s155, 0
      %s158 = sadd.s32 %s157, 1
      %s159 = scalar_select %p156, %s157, %s158
      %p162 = pneg %p156
      %p163 = scmp.eq.s32.totalorder %s18, 3
      %p164 = por %p162, %p163
      %p165 = scmp.ne.s32.totalorder %s157, %s160
      %p166 = scmp.eq.s32.totalorder %s18, 0
      %p167 = por %p165, %p166
      %p168 = scmp.ne.s32.totalorder %s157, %s160
      %p169 = scmp.eq.s32.totalorder %s23, 3
      %p170 = por %p168, %p169
      %p171 = scmp.ne.s32.totalorder %s160, %s161
      %p172 = scmp.eq.s32.totalorder %s23, 0
      %p173 = por %p171, %p172
      %p174 = scmp.ne.s32.totalorder %s160, %s161
      %p175 = scmp.eq.s32.totalorder %s24, 3
      %p176 = por %p174, %p175
      %p178 = scmp.ne.s32.totalorder %s161, %s177
      %p179 = scmp.eq.s32.totalorder %s24, 0
      %p180 = por %p178, %p179
      %p181 = scmp.le.s32.totalorder 1, %s18
      %p182 = scmp.lt.s32.totalorder %s18, 5
      %p183 = pnand %p181, %p182
      %p184 = pneg %p183
      // Predicated region
      $region9: #{tpu_custom_call.1} parent=5 // pred_check
        _
      $region10: #{tpu_custom_call.1} parent=5 // pred_check_branch
        %186 = sbr.rel (%p183) target = $region12
      $region11: #{tpu_custom_call.1} parent=5 // pred_region
        %s187 = ssub.s32 %s18, 1
        // Predicated region
        $region13: #{tpu_custom_call.1} parent=11 // pred_check
          %p188 = pneg %p105
        $region14: #{tpu_custom_call.1} parent=11 // pred_check_branch
          %190 = sbr.rel (%p188) target = $region16
        $region15: #{tpu_custom_call.1} parent=11 // pred_region
          _
        $region16: #{tpu_custom_call.1} parent=11 // pred_fallthru
          _
        // Predicated region
        $region17: #{tpu_custom_call.1} parent=11 // pred_check
          %p191 = pneg %p126
        $region18: #{tpu_custom_call.1} parent=11 // pred_check_branch
          %193 = sbr.rel (%p191) target = $region20
        $region19: #{tpu_custom_call.1} parent=11 // pred_region
          %s195 = ssub.s32 1024, 1024
          %196 = vsyncadd [#allocation7], %s195
          %s197 = sshll.u32 [#allocation8], 4
          %s198 = int_to_ptr.vmem [resolvable:$true] %s197
          %203 = dma.hbm_to_vmem [thread:$0]  %s3, 1024, %s198, [#allocation7], 64, 64, 4
        $region20: #{tpu_custom_call.1} parent=11 // pred_fallthru
          _
        // Predicated region
        $region21: #{tpu_custom_call.1} parent=11 // pred_check
          %p204 = pneg %p147
        $region22: #{tpu_custom_call.1} parent=11 // pred_check_branch
          %206 = sbr.rel (%p204) target = $region24
        $region23: #{tpu_custom_call.1} parent=11 // pred_region
          _
        $region24: #{tpu_custom_call.1} parent=11 // pred_fallthru
          _
      $region12: #{tpu_custom_call.1} parent=5 // pred_fallthru
        _
      %p207 = scmp.lt.s32.totalorder %s18, 4
      // Predicated region
      $region25: #{tpu_custom_call.1} parent=5 // pred_check
        %p208 = pneg %p207
      $region26: #{tpu_custom_call.1} parent=5 // pred_check_branch
        %210 = sbr.rel (%p208) target = $region28
      $region27: #{tpu_custom_call.1} parent=5 // pred_region
        // Predicated region
        $region29: #{tpu_custom_call.1} parent=27 // pred_check
          %p211 = pneg %p52
        $region30: #{tpu_custom_call.1} parent=27 // pred_check_branch
          %213 = sbr.rel (%p211) target = $region32
        $region31: #{tpu_custom_call.1} parent=27 // pred_region
          %s214 = sand.u32 %s42, 1
          %s215 = scalar_lea.sflag [#allocation4], %s214
          %s216 = sand.u32 %s42, 1
          %s217 = smul.addr %s216, 16
          %s218 = scalar_lea.vmem [#allocation3], %s217
          %s219 = smul.u32 2, %s25
          %s220 = smul.u32 2, %s26
          %s222 = ssub.s32 256, 256
          %223 = vsyncadd %s215, %s222
          %s224 = smul.addr %s219, 8
          %s225 = sadd.s32 %s220, %s224
          %s226 = smul.addr %s225, 64
          %s227 = scalar_lea.hbm %s0, %s226
          %s228 = sshll.u32 %s218, 4
          %s229 = int_to_ptr.vmem [resolvable:$true] %s228
          %234 = dma.hbm_to_vmem [thread:$0]  %s227, 256, %s229, %s215, 512, 128, 8
        $region32: #{tpu_custom_call.1} parent=27 // pred_fallthru
          _
        // Predicated region
        $region33: #{tpu_custom_call.1} parent=27 // pred_check
          %p235 = pneg %p78
        $region34: #{tpu_custom_call.1} parent=27 // pred_check_branch
          %237 = sbr.rel (%p235) target = $region36
        $region35: #{tpu_custom_call.1} parent=27 // pred_region
          %s238 = sand.u32 %s18, 1
          %s239 = scalar_lea.sflag [#allocation7], %s238
          %s240 = sand.u32 %s68, 1
          %s241 = smul.addr %s240, 128
          %s242 = scalar_lea.vmem [#allocation6], %s241
          %s243 = smul.u32 32, %s26
          %s245 = ssub.s32 2048, 2048
          %246 = vsyncadd %s239, %s245
          %s247 = smul.addr %s243, 64
          %s248 = scalar_lea.hbm %s1, %s247
          %s249 = sshll.u32 %s242, 4
          %s250 = int_to_ptr.vmem [resolvable:$true] %s249
          %255 = dma.hbm_to_vmem [thread:$0]  %s248, 2048, %s250, %s239, 64, 64, 4
        $region36: #{tpu_custom_call.1} parent=27 // pred_fallthru
          _
      $region28: #{tpu_custom_call.1} parent=5 // pred_fallthru
        _
      %p256 = scmp.le.s32.totalorder 1, %s18
      %p257 = scmp.lt.s32.totalorder %s18, 5
      %p258 = pnand %p256, %p257
      %p259 = pneg %p258
      // Predicated region
      $region37: #{tpu_custom_call.1} parent=5 // pred_check
        _
      $region38: #{tpu_custom_call.1} parent=5 // pred_check_branch
        %261 = sbr.rel (%p258) target = $region40
      $region39: #{tpu_custom_call.1} parent=5 // pred_region
        %s262 = ssub.s32 %s18, 1
        %s263 = sand.u32 %s45, 1
        %s264 = scalar_lea.sflag [#allocation4], %s263
        %s265 = sand.u32 %s45, 1
        %s266 = smul.addr %s265, 16
        %s267 = scalar_lea.vmem [#allocation3], %s266
        // Predicated region
        $region41: #{tpu_custom_call.1} parent=39 // pred_check
          %p268 = pneg %p58
        $region42: #{tpu_custom_call.1} parent=39 // pred_check_branch
          %270 = sbr.rel (%p268) target = $region44
        $region43: #{tpu_custom_call.1} parent=39 // pred_region
          %271 = dma.done %s264, 256
        $region44: #{tpu_custom_call.1} parent=39 // pred_fallthru
          _
        %s272 = sand.u32 %s23, 1
        %s273 = scalar_lea.sflag [#allocation7], %s272
        %s274 = sand.u32 %s71, 1
        %s275 = smul.addr %s274, 128
        %s276 = scalar_lea.vmem [#allocation6], %s275
        // Predicated region
        $region45: #{tpu_custom_call.1} parent=39 // pred_check
          %p277 = pneg %p84
        $region46: #{tpu_custom_call.1} parent=39 // pred_check_branch
          %279 = sbr.rel (%p277) target = $region48
        $region47: #{tpu_custom_call.1} parent=39 // pred_region
          %280 = dma.done %s273, 2048
        $region48: #{tpu_custom_call.1} parent=39 // pred_fallthru
          _
        // Predicated region
        $region49: #{tpu_custom_call.1} parent=39 // pred_check
          %p281 = pneg %p126
        $region50: #{tpu_custom_call.1} parent=39 // pred_check_branch
          %283 = sbr.rel (%p281) target = $region52
        $region51: #{tpu_custom_call.1} parent=39 // pred_region
          %284 = dma.done [#allocation7], 1024
        $region52: #{tpu_custom_call.1} parent=39 // pred_fallthru
          _
        %s285 = sand.u32 %s45, 1
        %s286 = scalar_lea.sflag [#allocation4], %s285
        %s287 = sand.u32 %s45, 1
        %s288 = smul.addr %s287, 16
        %s289 = scalar_lea.vmem [#allocation3], %s288
        %p290 = pneg %p58
        %p291 = pneg %p55
        %s292 = sand.u32 %s23, 1
        %s293 = scalar_lea.sflag [#allocation7], %s292
        %s294 = sand.u32 %s71, 1
        %s295 = smul.addr %s294, 128
        %s296 = scalar_lea.vmem [#allocation6], %s295
        %p297 = pneg %p84
        %p298 = pneg %p81
        %p299 = pneg %p105
        %p300 = pneg %p102
        %p301 = pneg %p126
        %p302 = pneg %p123
        %p303 = pneg %p147
        %p304 = pneg %p144
        %p305 = pneg %p173
        %p306 = pneg %p170
        %s307 = smul.u32 2, %s27
        %s308 = smul.u32 2, %s28
        %s309 = smul.u32 32, %s28
        %s310 = smul.u32 2, %s27
        %p312 = scmp.eq.s32.totalorder %s28, 0
        // Predicated region
        $region53: #{tpu_custom_call.1} parent=39 // pred_check
          %p313 = pneg %p312
        $region54: #{tpu_custom_call.1} parent=39 // pred_check_branch
          %315 = sbr.rel (%p313) target = $region56
        $region55: #{tpu_custom_call.1} parent=39 // pred_region
          %316 = vst [vmem:[#allocation2] sm:$0xff] 0.0
          %317 = vst [vmem:[#allocation2 + $0x8] sm:$0xff] 0.0
        $region56: #{tpu_custom_call.1} parent=39 // pred_fallthru
          _
        %v318 = vld [vmem:[#allocation2] sm:$0xff]
        %v319 = vld [vmem:[#allocation2 + $0x8] sm:$0xff]
        %v320 = vld [vmem:[%s267] sm:$0xff]
        %v321 = vld [vmem:[%s267 + $0x8] sm:$0xff]
        %v322 = vld [vmem:[%s276] sm:$0xf]
        %v323 = vld [vmem:[%s276 + $0x4] sm:$0xf]
        %v324 = vld [vmem:[%s276 + $0x8] sm:$0xf]
        %v325 = vld [vmem:[%s276 + $0xc] sm:$0xf]
        %v326 = vld [vmem:[%s276 + $0x10] sm:$0xf]
        %v327 = vld [vmem:[%s276 + $0x14] sm:$0xf]
        %v328 = vld [vmem:[%s276 + $0x18] sm:$0xf]
        %v329 = vld [vmem:[%s276 + $0x1c] sm:$0xf]
        %v330 = vld [vmem:[%s276 + $0x20] sm:$0xf]
        %v331 = vld [vmem:[%s276 + $0x24] sm:$0xf]
        %v332 = vld [vmem:[%s276 + $0x28] sm:$0xf]
        %v333 = vld [vmem:[%s276 + $0x2c] sm:$0xf]
        %v334 = vld [vmem:[%s276 + $0x30] sm:$0xf]
        %v335 = vld [vmem:[%s276 + $0x34] sm:$0xf]
        %v336 = vld [vmem:[%s276 + $0x38] sm:$0xf]
        %v337 = vld [vmem:[%s276 + $0x3c] sm:$0xf]
        %v338 = vld [vmem:[%s276 + $0x40] sm:$0xf]
        %v339 = vld [vmem:[%s276 + $0x44] sm:$0xf]
        %v340 = vld [vmem:[%s276 + $0x48] sm:$0xf]
        %v341 = vld [vmem:[%s276 + $0x4c] sm:$0xf]
        %v342 = vld [vmem:[%s276 + $0x50] sm:$0xf]
        %v343 = vld [vmem:[%s276 + $0x54] sm:$0xf]
        %v344 = vld [vmem:[%s276 + $0x58] sm:$0xf]
        %v345 = vld [vmem:[%s276 + $0x5c] sm:$0xf]
        %v346 = vld [vmem:[%s276 + $0x60] sm:$0xf]
        %v347 = vld [vmem:[%s276 + $0x64] sm:$0xf]
        %v348 = vld [vmem:[%s276 + $0x68] sm:$0xf]
        %v349 = vld [vmem:[%s276 + $0x6c] sm:$0xf]
        %v350 = vld [vmem:[%s276 + $0x70] sm:$0xf]
        %v351 = vld [vmem:[%s276 + $0x74] sm:$0xf]
        %v352 = vld [vmem:[%s276 + $0x78] sm:$0xf]
        %v353 = vld [vmem:[%s276 + $0x7c] sm:$0xf]
        %v356 = vunpack.c.l.b16 %v320
        %v357 = vunpack.c.h.b16 %v320
        %v358 = vunpack.c.l.b16 %v321
        %v359 = vunpack.c.h.b16 %v321
        %v360 = vpack.c.b16 %v358, %v356
        %v361 = vpack.c.b16 %v359, %v357
        %v396 = vunpack.c.l.b16 %v322
        %v397 = vunpack.c.l.b16 %v323
        %v398 = vunpack.c.l.b16 %v324
        %v399 = vunpack.c.l.b16 %v325
        %v400 = vunpack.c.l.b16 %v326
        %v401 = vunpack.c.l.b16 %v327
        %v402 = vunpack.c.l.b16 %v328
        %v403 = vunpack.c.l.b16 %v329
        %v404 = vunpack.c.l.b16 %v330
        %v405 = vunpack.c.l.b16 %v331
        %v406 = vunpack.c.l.b16 %v332
        %v407 = vunpack.c.l.b16 %v333
        %v408 = vunpack.c.l.b16 %v334
        %v409 = vunpack.c.l.b16 %v335
        %v410 = vunpack.c.l.b16 %v336
        %v411 = vunpack.c.l.b16 %v337
        %v412 = vunpack.c.l.b16 %v338
        %v413 = vunpack.c.l.b16 %v339
        %v414 = vunpack.c.l.b16 %v340
        %v415 = vunpack.c.l.b16 %v341
        %v416 = vunpack.c.l.b16 %v342
        %v417 = vunpack.c.l.b16 %v343
        %v418 = vunpack.c.l.b16 %v344
        %v419 = vunpack.c.l.b16 %v345
        %v420 = vunpack.c.l.b16 %v346
        %v421 = vunpack.c.l.b16 %v347
        %v422 = vunpack.c.l.b16 %v348
        %v423 = vunpack.c.l.b16 %v349
        %v424 = vunpack.c.l.b16 %v350
        %v425 = vunpack.c.l.b16 %v351
        %v426 = vunpack.c.l.b16 %v352
        %v427 = vunpack.c.l.b16 %v353
        %v428 = vpack.c.b16 %v397, %v396
        %v429 = vpack.c.b16 %v399, %v398
        %v430 = vpack.c.b16 %v401, %v400
        %v431 = vpack.c.b16 %v403, %v402
        %v432 = vpack.c.b16 %v405, %v404
        %v433 = vpack.c.b16 %v407, %v406
        %v434 = vpack.c.b16 %v409, %v408
        %v435 = vpack.c.b16 %v411, %v410
        %v436 = vpack.c.b16 %v413, %v412
        %v437 = vpack.c.b16 %v415, %v414
        %v438 = vpack.c.b16 %v417, %v416
        %v439 = vpack.c.b16 %v419, %v418
        %v440 = vpack.c.b16 %v421, %v420
        %v441 = vpack.c.b16 %v423, %v422
        %v442 = vpack.c.b16 %v425, %v424
        %v443 = vpack.c.b16 %v427, %v426
        %460 = vmatprep.subr.bf16.mxu0 0
        %461 = vmatpush1.bf16.msra.mxu0 %v435
        %462 = vmatprep.subr.bf16.mxu0 0
        %463 = vmatpush1.bf16.msra.mxu0 %v434
        %464 = vmatprep.subr.bf16.mxu0 0
        %465 = vmatpush1.bf16.msra.mxu0 %v433
        %466 = vmatprep.subr.bf16.mxu0 0
        %467 = vmatpush1.bf16.msra.mxu0 %v432
        %468 = vmatprep.subr.bf16.mxu0 0
        %469 = vmatpush1.bf16.msra.mxu0 %v431
        %470 = vmatprep.subr.bf16.mxu0 0
        %471 = vmatpush1.bf16.msra.mxu0 %v430
        %472 = vmatprep.subr.bf16.mxu0 0
        %473 = vmatpush1.bf16.msra.mxu0 %v429
        %474 = vmatprep.subr.bf16.mxu0 0
        %475 = vmatpush1.bf16.msra.mxu0 %v428
        %476 = vmatprep.subr.bf16.mxu0 0
        %477 = vmatpush2.bf16.msra.mxu0 %v443
        %478 = vmatprep.subr.bf16.mxu0 0
        %479 = vmatpush2.bf16.msra.mxu0 %v442
        %480 = vmatprep.subr.bf16.mxu0 0
        %481 = vmatpush2.bf16.msra.mxu0 %v441
        %482 = vmatprep.subr.bf16.mxu0 0
        %483 = vmatpush2.bf16.msra.mxu0 %v440
        %484 = vmatprep.subr.bf16.mxu0 0
        %485 = vmatpush2.bf16.msra.mxu0 %v439
        %486 = vmatprep.subr.bf16.mxu0 0
        %487 = vmatpush2.bf16.msra.mxu0 %v438
        %488 = vmatprep.subr.bf16.mxu0 0
        %489 = vmatpush2.bf16.msra.mxu0 %v437
        %490 = vmatprep.subr.bf16.mxu0 0
        %491 = vmatpush2.bf16.msra.mxu0 %v436
        %492 = vmatprep.mubr.bf16.mxu0 %v361
        %493 = vmatmul.mubr.bf16.gmra.mxu0 %v360
        %v494 = vpop.f32.mrf.mxu0
        %v495 = vadd.f32 0.0, %v494
        %v496 = vpop.f32.mrf.mxu0
        %v497 = vpop.f32.mrf.mxu0
        %v498 = vadd.f32 0.0, %v497
        %v499 = vpop.f32.mrf.mxu0
        %500 = vdwg.mxu0
        %v501 = vadd.f32 %v318, %v495
        %v502 = vadd.f32 %v319, %v498
        %503 = vst [vmem:[#allocation2] sm:$0xff] %v501
        %504 = vst [vmem:[#allocation2 + $0x8] sm:$0xff] %v502
        %p505 = scmp.eq.s32.totalorder %s28, 3
        // Predicated region
        $region57: #{tpu_custom_call.1} parent=39 // pred_check
          %p506 = pneg %p505
        $region58: #{tpu_custom_call.1} parent=39 // pred_check_branch
          %508 = sbr.rel (%p506) target = $region60
        $region59: #{tpu_custom_call.1} parent=39 // pred_region
          %v509 = vld [vmem:[#allocation2] sm:$0xff]
          %v510 = vld [vmem:[#allocation2 + $0x8] sm:$0xff]
          %v511 = vld [vmem:[%s2] sm:$0x1]
          %v513 = vlaneseq
          %v514 = vshrl.u32 %v513, 7
          %v515 = vsub.s32 0, %v514
          %v516 = vrot.slane %v511, %v515
          %v518 = vadd.f32 %v509, %v516
          %v519 = vadd.f32 %v510, %v516
          %v520 = vmul.f32 %v518, %v518
          %v521 = vmul.f32 %v519, %v519
          %v522 = vmul.f32 %v518, %v520
          %v523 = vmul.f32 %v519, %v521
          %v524 = vmul.f32 %v522, 0.044715
          %v525 = vmul.f32 %v523, 0.044715
          %v526 = vadd.f32 %v518, %v524
          %v527 = vadd.f32 %v519, %v525
          %v528 = vmul.f32 %v526, 0.7978846
          %v529 = vmul.f32 %v527, 0.7978846
          %v530 = vtanh.pop %v528
          %v531 = vtanh.pop %v529
          %v532 = vadd.f32 %v530, 1.0
          %v533 = vadd.f32 %v531, 1.0
          %v534 = vmul.f32 %v532, 0.5
          %v535 = vmul.f32 %v533, 0.5
          %v536 = vmul.f32 %v518, %v534
          %v537 = vmul.f32 %v519, %v535
          %v538 = vpack.c.bf16 %v537, %v536
          %v539 = vld [vmem:[#allocation8] sm:$0xf]
          %v540 = vld [vmem:[#allocation8 + $0x4] sm:$0xf]
          %v541 = vld [vmem:[#allocation8 + $0x8] sm:$0xf]
          %v542 = vld [vmem:[#allocation8 + $0xc] sm:$0xf]
          %v543 = vld [vmem:[#allocation8 + $0x10] sm:$0xf]
          %v544 = vld [vmem:[#allocation8 + $0x14] sm:$0xf]
          %v545 = vld [vmem:[#allocation8 + $0x18] sm:$0xf]
          %v546 = vld [vmem:[#allocation8 + $0x1c] sm:$0xf]
          %v547 = vld [vmem:[#allocation8 + $0x20] sm:$0xf]
          %v548 = vld [vmem:[#allocation8 + $0x24] sm:$0xf]
          %v549 = vld [vmem:[#allocation8 + $0x28] sm:$0xf]
          %v550 = vld [vmem:[#allocation8 + $0x2c] sm:$0xf]
          %v551 = vld [vmem:[#allocation8 + $0x30] sm:$0xf]
          %v552 = vld [vmem:[#allocation8 + $0x34] sm:$0xf]
          %v553 = vld [vmem:[#allocation8 + $0x38] sm:$0xf]
          %v554 = vld [vmem:[#allocation8 + $0x3c] sm:$0xf]
          %v555 = vld [vmem:[%s4] sm:$0x1]
          %v557 = vlaneseq
          %v558 = vshrl.u32 %v557, 7
          %v559 = vsub.s32 0, %v558
          %v560 = vrot.slane %v555, %v559
          %v578 = vunpack.c.l.b16 %v539
          %v579 = vunpack.c.l.b16 %v540
          %v580 = vunpack.c.l.b16 %v541
          %v581 = vunpack.c.l.b16 %v542
          %v582 = vunpack.c.l.b16 %v543
          %v583 = vunpack.c.l.b16 %v544
          %v584 = vunpack.c.l.b16 %v545
          %v585 = vunpack.c.l.b16 %v546
          %v586 = vunpack.c.l.b16 %v547
          %v587 = vunpack.c.l.b16 %v548
          %v588 = vunpack.c.l.b16 %v549
          %v589 = vunpack.c.l.b16 %v550
          %v590 = vunpack.c.l.b16 %v551
          %v591 = vunpack.c.l.b16 %v552
          %v592 = vunpack.c.l.b16 %v553
          %v593 = vunpack.c.l.b16 %v554
          %v594 = vpack.c.b16 %v579, %v578
          %v595 = vpack.c.b16 %v581, %v580
          %v596 = vpack.c.b16 %v583, %v582
          %v597 = vpack.c.b16 %v585, %v584
          %v598 = vpack.c.b16 %v587, %v586
          %v599 = vpack.c.b16 %v589, %v588
          %v600 = vpack.c.b16 %v591, %v590
          %v601 = vpack.c.b16 %v593, %v592
          %610 = vmatprep.subr.bf16.mxu0 0
          %611 = vmatpush1.bf16.msra.mxu0 %v601
          %612 = vmatprep.subr.bf16.mxu0 0
          %613 = vmatpush1.bf16.msra.mxu0 %v600
          %614 = vmatprep.subr.bf16.mxu0 0
          %615 = vmatpush1.bf16.msra.mxu0 %v599
          %616 = vmatprep.subr.bf16.mxu0 0
          %617 = vmatpush1.bf16.msra.mxu0 %v598
          %618 = vmatprep.subr.bf16.mxu0 0
          %619 = vmatpush1.bf16.msra.mxu0 %v597
          %620 = vmatprep.subr.bf16.mxu0 0
          %621 = vmatpush1.bf16.msra.mxu0 %v596
          %622 = vmatprep.subr.bf16.mxu0 0
          %623 = vmatpush1.bf16.msra.mxu0 %v595
          %624 = vmatprep.subr.bf16.mxu0 0
          %625 = vmatpush1.bf16.msra.mxu0 %v594
          %626 = vmatprep.subr.bf16.mxu0 0
          %627 = vmatpush2.bf16.msra.mxu0 0
          %628 = vmatprep.subr.bf16.mxu0 0
          %629 = vmatpush2.bf16.msra.mxu0 0
          %630 = vmatprep.subr.bf16.mxu0 0
          %631 = vmatpush2.bf16.msra.mxu0 0
          %632 = vmatprep.subr.bf16.mxu0 0
          %633 = vmatpush2.bf16.msra.mxu0 0
          %634 = vmatprep.subr.bf16.mxu0 0
          %635 = vmatpush2.bf16.msra.mxu0 0
          %636 = vmatprep.subr.bf16.mxu0 0
          %637 = vmatpush2.bf16.msra.mxu0 0
          %638 = vmatprep.subr.bf16.mxu0 0
          %639 = vmatpush2.bf16.msra.mxu0 0
          %640 = vmatprep.subr.bf16.mxu0 0
          %641 = vmatpush2.bf16.msra.mxu0 0
          %642 = vmatprep.mubr.bf16.mxu0 0
          %643 = vmatmul.mubr.bf16.gmra.mxu0 %v538
          %v644 = vpop.f32.mrf.mxu0
          %v645 = vadd.f32 %v560, %v644
          %v646 = vpop.f32.mrf.mxu0
          %v647 = vpop.f32.mrf.mxu0
          %v648 = vadd.f32 %v560, %v647
          %v649 = vpop.f32.mrf.mxu0
          %650 = vdwg.mxu0
          %651 = vst [vmem:[#allocation9] sm:$0xff] %v645
          %652 = vst [vmem:[#allocation9 + $0x8] sm:$0xff] %v648
        $region60: #{tpu_custom_call.1} parent=39 // pred_fallthru
          _
        // Predicated region
        $region61: #{tpu_custom_call.1} parent=39 // pred_check
          %p653 = pneg %p170
        $region62: #{tpu_custom_call.1} parent=39 // pred_check_branch
          %655 = sbr.rel (%p653) target = $region64
        $region63: #{tpu_custom_call.1} parent=39 // pred_region
          %s656 = smul.u32 2, %s27
          %s658 = ssub.s32 256, 256
          %659 = vsyncadd [#allocation5], %s658
          %s660 = smul.addr %s656, 128
          %s661 = scalar_lea.hbm %s5, %s660
          %s662 = sshll.u32 [#allocation9], 4
          %s663 = int_to_ptr.vmem [resolvable:$true] %s662
          %668 = dma.vmem_to_hbm [thread:$0]  %s663, 256, %s661, [#allocation5], 128, 128, 8
        $region64: #{tpu_custom_call.1} parent=39 // pred_fallthru
          _
        // Predicated region
        $region65: #{tpu_custom_call.1} parent=39 // pred_check
          %p669 = pneg %p170
        $region66: #{tpu_custom_call.1} parent=39 // pred_check_branch
          %671 = sbr.rel (%p669) target = $region68
        $region67: #{tpu_custom_call.1} parent=39 // pred_region
          %672 = dma.done [#allocation5], 256
        $region68: #{tpu_custom_call.1} parent=39 // pred_fallthru
          _
      $region40: #{tpu_custom_call.1} parent=5 // pred_fallthru
        _
      %p673 = scmp.le.s32.totalorder 2, %s18
      // Predicated region
      $region69: #{tpu_custom_call.1} parent=5 // pred_check
        %p674 = pneg %p673
      $region70: #{tpu_custom_call.1} parent=5 // pred_check_branch
        %676 = sbr.rel (%p674) target = $region72
      $region71: #{tpu_custom_call.1} parent=5 // pred_region
        %s677 = ssub.s32 %s18, 2
      $region72: #{tpu_custom_call.1} parent=5 // pred_fallthru
        _
    $region6: #{tpu_custom_call.1} parent=1 // loop_footer
      %s22 = sadd.s32 1, %s18
    $region7: #{tpu_custom_call.1} parent=1 // loop_footer_branch
      %17 = sbr.rel target = $region3
    $region8: #{tpu_custom_call.1} parent=1 // loop_exit
      _
    %678 = vsyncpa [#allocation4], 1
    %s679 = scalar_lea.sflag [#allocation4], 1
    %680 = vsyncpa %s679, 1
    %681 = vsyncpa [#allocation7], 1
    %s682 = scalar_lea.sflag [#allocation7], 1
    %683 = vsyncpa %s682, 1
    %684 = vsyncpa [#allocation5], 1
    %s685 = scalar_lea.sflag [#allocation5], 1
    %686 = vsyncpa %s685, 1

</llo_original>
